<compile_context>
chip_gen: v6e
topology: v6e:2x2x1
jax: 0.10.0
libtpu: 0.0.40
codegen_flags: <defaults>
</compile_context>

<pallas_src>
import jax
import jax.numpy as jnp
from jax import lax
from jax.experimental import pallas as pl
from jax.experimental.pallas import tpu as pltpu

LANES = 128
SUBLANES = 8
# ~4 MiB per input block (review: 2-4 MiB keeps a mem-bound stream at ~85%+
# of the HBM roofline).
TARGET_BLOCK_BYTES = 4 * 1024 * 1024
# 2 inputs x 2 pipeline buffers x <=4 MiB + tiny outputs, with headroom.
VMEM_LIMIT_BYTES = 32 * 1024 * 1024


def _dice_partial_sums(x2d, t2d, block_rows=None):
    """Returns (sum(x*t), sum(x)+sum(t)) over (rows, 128) inputs as f32 scalars."""
    rows = x2d.shape[0]
    assert rows % SUBLANES == 0 and x2d.shape[1] == LANES

    # Dtype-aware block sizing: fixed bytes per block, not fixed rows.
    max_bpe = max(x2d.dtype.itemsize, t2d.dtype.itemsize)
    if block_rows is None:
        block_rows = TARGET_BLOCK_BYTES // (max_bpe * LANES)
    block_rows = max(SUBLANES, (block_rows // SUBLANES) * SUBLANES)
    tile_rows = min(block_rows, rows)

    nblocks = pl.cdiv(rows, tile_rows)
    # Shard the stream across the two TensorCores on v7x via a leading
    # "parallel" axis; serializes harmlessly on single-TC chips.
    num_cores = 2 if nblocks >= 2 else 1
    nblk_per_core = pl.cdiv(nblocks, num_cores)
    nfull = rows // tile_rows                      # blocks with every row valid
    needs_mask = (num_cores * nblk_per_core) != nfull

    def kernel(x_ref, t_ref, inter_ref, sumxt_ref):
        c = pl.program_id(0)
        i = pl.program_id(1)

        @pl.when(i == 0)
        def _():
            inter_ref[...] = jnp.zeros_like(inter_ref)
            sumxt_ref[...] = jnp.zeros_like(sumxt_ref)

        x = x_ref[...].astype(jnp.float32)
        t = t_ref[...].astype(jnp.float32)

        def accumulate(xv, tv):
            # Fold the whole block into a single (8, 128) vreg with pure
            # element-wise VPU adds; no per-step XLU reduce.
            inter_ref[...] += jnp.sum((xv * tv).reshape(-1, SUBLANES, LANES), axis=0)
            sumxt_ref[...] += jnp.sum((xv + tv).reshape(-1, SUBLANES, LANES), axis=0)

        if not needs_mask:
            accumulate(x, t)
        else:
            g = c * nblk_per_core + i              # logical block index

            @pl.when(g < nfull)
            def _():                               # steady state: no mask math
                accumulate(x, t)

            @pl.when(g >= nfull)
            def _():                               # partial / past-the-end block
                valid = rows - g * tile_rows       # <= 0 for fully OOB grid cells
                row_idx = lax.broadcasted_iota(jnp.int32, (tile_rows, LANES), 0)
                keep = row_idx < valid
                accumulate(jnp.where(keep, x, 0.0), jnp.where(keep, t, 0.0))

    def in_map(c, i):
        # Clamp so grid cells past the last block re-read an in-bounds block
        # (their contribution is masked to zero above); avoids OOB DMA.
        return (jnp.minimum(c * nblk_per_core + i, nblocks - 1), 0)

    in_spec = pl.BlockSpec((tile_rows, LANES), in_map)
    out_spec = pl.BlockSpec((SUBLANES, LANES), lambda c, i: (c, 0))

    inter, sumxt = pl.pallas_call(
        kernel,
        out_shape=(jax.ShapeDtypeStruct((num_cores * SUBLANES, LANES), jnp.float32),
                   jax.ShapeDtypeStruct((num_cores * SUBLANES, LANES), jnp.float32)),
        grid_spec=pltpu.PrefetchScalarGridSpec(
            num_scalar_prefetch=0,
            grid=(num_cores, nblk_per_core),
            in_specs=[in_spec, in_spec],
            out_specs=(out_spec, out_spec)),
        compiler_params=pltpu.CompilerParams(
            dimension_semantics=("parallel", "arbitrary"),
            vmem_limit_bytes=VMEM_LIMIT_BYTES),
    )(x2d, t2d)

    return jnp.sum(inter), jnp.sum(sumxt)


def dice_loss(inputs, targets, smooth=1.0, block_rows=None):
    """Pallas implementation of DiceLoss.forward (returns a scalar)."""
    x = jnp.reshape(inputs, (-1,))
    t = jnp.reshape(targets, (-1,))
    n = x.shape[0]

    def _stream_dtype(a):
        # Stream in the narrowest supported native dtype; the in-kernel
        # astype(f32) upconverts, so we read N/2N bytes instead of writing and
        # re-reading a 4N-byte f32 copy.
        dt = a.dtype
        if dt == jnp.float32 or dt == jnp.bfloat16:
            return a
        if dt == jnp.bool_:
            return a.astype(jnp.int8)
        if dt == jnp.int8 or dt == jnp.uint8:
            return a
        return a.astype(jnp.float32)

    x = _stream_dtype(x)
    t = _stream_dtype(t)

    # Main body: largest prefix that is a whole number of (8, 128) vregs.
    # The (<1024-element) tail is summed with plain jnp ops -- no full-array
    # pad/copy of the inputs.
    n_main = (n // (SUBLANES * LANES)) * (SUBLANES * LANES)

    inter = jnp.float32(0.0)
    sumxt = jnp.float32(0.0)
    if n_main:
        x2d = x[:n_main].reshape(-1, LANES)
        t2d = t[:n_main].reshape(-1, LANES)
        inter, sumxt = _dice_partial_sums(x2d, t2d, block_rows=block_rows)
    if n_main < n:
        xt = x[n_main:].astype(jnp.float32)
        tt = t[n_main:].astype(jnp.float32)
        inter = inter + jnp.sum(xt * tt)
        sumxt = sumxt + jnp.sum(xt) + jnp.sum(tt)

    dice = (2.0 * inter + smooth) / (sumxt + smooth)
    return 1.0 - dice


def dice_loss_ref(inputs, targets, smooth=1.0):
    x = jnp.reshape(inputs, (-1,)).astype(jnp.float32)
    t = jnp.reshape(targets, (-1,)).astype(jnp.float32)
    inter = jnp.sum(x * t)
    dice = (2.0 * inter + smooth) / (jnp.sum(x) + jnp.sum(t) + smooth)
    return 1.0 - dice


if __name__ == "__main__":
    key = jax.random.PRNGKey(0)
    ks = jax.random.split(key, 8)

    def check(loss, ref):
        assert jnp.allclose(loss, ref, atol=1e-5, rtol=1e-5), (loss, ref)

    # 1) Primary small case consistent with the module (NCHW sigmoid outputs vs mask).
    x1 = jax.nn.sigmoid(jax.random.normal(ks[0], (2, 4, 16, 16), dtype=jnp.float32))
    t1 = (jax.random.uniform(ks[1], (2, 4, 16, 16)) > 0.5).astype(jnp.float32)
    l1 = jax.block_until_ready(dice_loss(x1, t1, smooth=1.0))
    check(l1, dice_loss_ref(x1, t1, smooth=1.0))

    # 2) Bool mask target streamed as int8 (no wrapper-side f32 upcast pass).
    x2 = jax.nn.sigmoid(jax.random.normal(ks[2], (2, 4, 128, 144), dtype=jnp.float32))
    t2 = jax.random.uniform(ks[3], (2, 4, 128, 144)) > 0.5
    l2 = jax.block_until_ready(dice_loss(x2, t2, smooth=1.0))
    check(l2, dice_loss_ref(x2, t2, smooth=1.0))

    # 3) Ragged size: exercises the plain-jnp tail path (no full-array pad).
    x3 = jax.nn.sigmoid(jax.random.normal(ks[4], (3, 5, 17, 19), dtype=jnp.float32))
    t3 = (jax.random.uniform(ks[5], (3, 5, 17, 19)) > 0.5).astype(jnp.float32)
    l3 = jax.block_until_ready(dice_loss(x3, t3, smooth=1.0))
    check(l3, dice_loss_ref(x3, t3, smooth=1.0))

    # 4) Forced small blocks: multi-block grid, 2-core "parallel" axis, and the
    #    gated masked partial / past-the-end block path.
    x4 = jax.nn.sigmoid(jax.random.normal(ks[6], (2, 4, 40, 32), dtype=jnp.float32))
    t4 = (jax.random.uniform(ks[7], (2, 4, 40, 32)) > 0.5).astype(jnp.float32)
    l4a = jax.block_until_ready(dice_loss(x4, t4, smooth=1.0, block_rows=32))
    check(l4a, dice_loss_ref(x4, t4, smooth=1.0))
    l4b = jax.block_until_ready(dice_loss(x4, t4, smooth=1.0, block_rows=24))
    check(l4b, dice_loss_ref(x4, t4, smooth=1.0))

    print("KERNEL_OK")
</pallas_src>

<mosaic_0001>
module attributes {stable_mosaic.version = 11 : i64} {
  func.func @kernel(%arg0: i32, %arg1: i32, %arg2: memref<16x128xf32, #tpu.memory_space<vmem>>, %arg3: memref<16x128xf32, #tpu.memory_space<vmem>>, %arg4: memref<8x128xf32, #tpu.memory_space<vmem>>, %arg5: memref<8x128xf32, #tpu.memory_space<vmem>>) attributes {dimension_semantics = [#tpu.dimension_semantics<parallel>, #tpu.dimension_semantics<arbitrary>], iteration_bounds = array<i64: 1, 1>, scalar_prefetch = 0 : i64, scratch_operands = 0 : i64, tpu.core_type = #tpu.core_type<tc>, window_params = [{transform_indices = @transform_0, window_bounds = array<i64: 16, 128>}, {transform_indices = @transform_1, window_bounds = array<i64: 16, 128>}, {transform_indices = @transform_2, window_bounds = array<i64: 8, 128>}, {transform_indices = @transform_3, window_bounds = array<i64: 8, 128>}]} {
    %c0_i32 = arith.constant 0 : i32
    %0 = arith.cmpi eq, %arg1, %c0_i32 : i32
    %1 = arith.extui %0 : i1 to i32
    %c0_i32_0 = arith.constant 0 : i32
    %2 = arith.cmpi ne, %1, %c0_i32_0 : i32
    scf.if %2 {
      %cst_13 = arith.constant 0.000000e+00 : f32
      %17 = vector.broadcast %cst_13 : f32 to vector<8x128xf32>
      %c0_14 = arith.constant 0 : index
      %c0_15 = arith.constant 0 : index
      %18 = vector.load %arg4[%c0_14, %c0_15] : memref<8x128xf32, #tpu.memory_space<vmem>>, vector<8x128xf32>
      tpu.vector_store %arg4[%c0_14, %c0_15], %17 {strides = array<i32>} : memref<8x128xf32, #tpu.memory_space<vmem>>, vector<8x128xf32>,
      %cst_16 = arith.constant 0.000000e+00 : f32
      %19 = vector.broadcast %cst_16 : f32 to vector<8x128xf32>
      %c0_17 = arith.constant 0 : index
      %c0_18 = arith.constant 0 : index
      %20 = vector.load %arg5[%c0_17, %c0_18] : memref<8x128xf32, #tpu.memory_space<vmem>>, vector<8x128xf32>
      tpu.vector_store %arg5[%c0_17, %c0_18], %19 {strides = array<i32>} : memref<8x128xf32, #tpu.memory_space<vmem>>, vector<8x128xf32>,
    } else {
    }
    %c0 = arith.constant 0 : index
    %c0_1 = arith.constant 0 : index
    %3 = vector.load %arg2[%c0, %c0_1] : memref<16x128xf32, #tpu.memory_space<vmem>>, vector<16x128xf32>
    %c0_2 = arith.constant 0 : index
    %c0_3 = arith.constant 0 : index
    %4 = vector.load %arg3[%c0_2, %c0_3] : memref<16x128xf32, #tpu.memory_space<vmem>>, vector<16x128xf32>
    %c0_4 = arith.constant 0 : index
    %c0_5 = arith.constant 0 : index
    %5 = vector.load %arg4[%c0_4, %c0_5] : memref<8x128xf32, #tpu.memory_space<vmem>>, vector<8x128xf32>
    %6 = arith.mulf %3, %4 : vector<16x128xf32>
    %7 = vector.shape_cast %6 : vector<16x128xf32> to vector<2x8x128xf32>
    %cst = arith.constant dense<0.000000e+00> : vector<8x128xf32>
    %8 = vector.multi_reduction <add>, %7, %cst [0] : vector<2x8x128xf32> to vector<8x128xf32>
    %9 = arith.addf %5, %8 : vector<8x128xf32>
    %c0_6 = arith.constant 0 : index
    %c0_7 = arith.constant 0 : index
    %10 = vector.load %arg4[%c0_6, %c0_7] : memref<8x128xf32, #tpu.memory_space<vmem>>, vector<8x128xf32>
    tpu.vector_store %arg4[%c0_6, %c0_7], %9 {strides = array<i32>} : memref<8x128xf32, #tpu.memory_space<vmem>>, vector<8x128xf32>,
    %c0_8 = arith.constant 0 : index
    %c0_9 = arith.constant 0 : index
    %11 = vector.load %arg5[%c0_8, %c0_9] : memref<8x128xf32, #tpu.memory_space<vmem>>, vector<8x128xf32>
    %12 = arith.addf %3, %4 : vector<16x128xf32>
    %13 = vector.shape_cast %12 : vector<16x128xf32> to vector<2x8x128xf32>
    %cst_10 = arith.constant dense<0.000000e+00> : vector<8x128xf32>
    %14 = vector.multi_reduction <add>, %13, %cst_10 [0] : vector<2x8x128xf32> to vector<8x128xf32>
    %15 = arith.addf %11, %14 : vector<8x128xf32>
    %c0_11 = arith.constant 0 : index
    %c0_12 = arith.constant 0 : index
    %16 = vector.load %arg5[%c0_11, %c0_12] : memref<8x128xf32, #tpu.memory_space<vmem>>, vector<8x128xf32>
    tpu.vector_store %arg5[%c0_11, %c0_12], %15 {strides = array<i32>} : memref<8x128xf32, #tpu.memory_space<vmem>>, vector<8x128xf32>,
    return
  }
  func.func @transform_0(%arg0: i32, %arg1: i32) -> (i32, i32) {
    %c1_i32 = arith.constant 1 : i32
    %0 = arith.muli %arg0, %c1_i32 : i32
    %1 = arith.addi %0, %arg1 : i32
    %c0_i32 = arith.constant 0 : i32
    %2 = arith.minsi %1, %c0_i32 : i32
    %c0_i32_0 = arith.constant 0 : i32
    %c0_i32_1 = arith.constant 0 : i32
    return %2, %c0_i32_0 : i32, i32
  }
  func.func @transform_1(%arg0: i32, %arg1: i32) -> (i32, i32) {
    %c1_i32 = arith.constant 1 : i32
    %0 = arith.muli %arg0, %c1_i32 : i32
    %1 = arith.addi %0, %arg1 : i32
    %c0_i32 = arith.constant 0 : i32
    %2 = arith.minsi %1, %c0_i32 : i32
    %c0_i32_0 = arith.constant 0 : i32
    %c0_i32_1 = arith.constant 0 : i32
    return %2, %c0_i32_0 : i32, i32
  }
  func.func @transform_2(%arg0: i32, %arg1: i32) -> (i32, i32) {
    %c0_i32 = arith.constant 0 : i32
    %c0_i32_0 = arith.constant 0 : i32
    return %arg0, %c0_i32 : i32, i32
  }
  func.func @transform_3(%arg0: i32, %arg1: i32) -> (i32, i32) {
    %c0_i32 = arith.constant 0 : i32
    %c0_i32_0 = arith.constant 0 : i32
    return %arg0, %c0_i32 : i32, i32
  }
}

</mosaic_0001>

<llo_original>
// kernel: tpu_custom_call.1
$region0: #{tpu_custom_call.1}
  #allocation0 [shape = 'u32[]', space=smem, size = 0x4, offset = 0x4, fixed_abs, tag = 'smem constant byte address 0x4 - core index']
  #allocation1 [shape = 'u32[144,128]{1,0:T(1,128)}', space=vmem, size = 0x12000, scoped, tag = 'internal scratch']
  %s0 = inlined_call_operand.hbm [shape: f32[16,128], index: 0, kind: input, shape index: {}]
  %s1 = inlined_call_operand.hbm [shape: f32[16,128], index: 1, kind: input, shape index: {}]
  %s2 = inlined_call_operand.hbm [shape: f32[8,128], index: 2, kind: output, shape index: {0}]
  %s3 = inlined_call_operand.hbm [shape: f32[8,128], index: 3, kind: output, shape index: {1}]
  %4 = xla_tuple %s2, %s3
  %s5 = sld [smem:[#allocation0]]
  $region38: #{tpu_custom_call.1} parent=0
    _
  %s7 = ssub.s32 1, %s5
  %s8 = scalar_select 0, %s7, %s5
  $region1: #{tpu_custom_call.1} parent=0
    #allocation2 [shape = 'u8[8192]{0}', space=vmem, size = 0x2000, scoped, tag = 'input window, operand 0, single buffered']
    #allocation3 [shape = 's32[1]{0}', space=sflag, size = 0x4, scoped, tag = 'scoped memory for tpu_custom_call.1']
    #allocation4 [shape = 's32[1]{0}', space=sflag, size = 0x4, scoped, tag = 'scoped memory for tpu_custom_call.1']
    #allocation5 [shape = 'u8[8192]{0}', space=vmem, size = 0x2000, scoped, tag = 'input window, operand 1, single buffered']
    #allocation6 [shape = 's32[1]{0}', space=sflag, size = 0x4, scoped, tag = 'scoped memory for tpu_custom_call.1']
    #allocation7 [shape = 'u8[4096]{0}', space=vmem, size = 0x1000, scoped, tag = 'output window, operand 0, single buffered']
    #allocation8 [shape = 'u8[4096]{0}', space=vmem, size = 0x1000, scoped, tag = 'output window, operand 1, single buffered']
    #allocation9 [shape = 's32[1]{0}', space=sflag, size = 0x4, scoped, tag = 'scoped memory for tpu_custom_call.1']
    %9 = vsyncpa [#allocation3], 0
    %10 = vsyncpa [#allocation6], 0
    %11 = vsyncpa [#allocation4], 0
    %12 = vsyncpa [#allocation9], 0
    // Predicated region
    $region2: #{tpu_custom_call.1} parent=1 // pred_check
      _
    $region3: #{tpu_custom_call.1} parent=1 // pred_check_branch
      %14 = sbr.rel (0) target = $region5
    $region4: #{tpu_custom_call.1} parent=1 // pred_region
      %s15 = sadd.s32 0, 0
      %p16 = scmp.lt.s32.totalorder %s15, 0
      %s17 = scalar_select %p16, %s15, 0
      %s18 = smul.u32 2, %s17
      %s20 = ssub.s32 256, 256
      %21 = vsyncadd [#allocation3], %s20
      %s22 = smul.addr %s18, 128
      %s23 = scalar_lea.hbm %s0, %s22
      %s24 = sshll.u32 [#allocation2], 4
      %s25 = int_to_ptr.vmem [resolvable:$true] %s24
      %30 = dma.hbm_to_vmem [thread:$0]  %s23, 256, %s25, [#allocation3], 128, 128, 8
    $region5: #{tpu_custom_call.1} parent=1 // pred_fallthru
      _
    // Predicated region
    $region6: #{tpu_custom_call.1} parent=1 // pred_check
      _
    $region7: #{tpu_custom_call.1} parent=1 // pred_check_branch
      %32 = sbr.rel (0) target = $region9
    $region8: #{tpu_custom_call.1} parent=1 // pred_region
      %s33 = sadd.s32 0, 0
      %p34 = scmp.lt.s32.totalorder %s33, 0
      %s35 = scalar_select %p34, %s33, 0
      %s36 = smul.u32 2, %s35
      %s38 = ssub.s32 256, 256
      %39 = vsyncadd [#allocation6], %s38
      %s40 = smul.addr %s36, 128
      %s41 = scalar_lea.hbm %s1, %s40
      %s42 = sshll.u32 [#allocation5], 4
      %s43 = int_to_ptr.vmem [resolvable:$true] %s42
      %48 = dma.hbm_to_vmem [thread:$0]  %s41, 256, %s43, [#allocation6], 128, 128, 8
    $region9: #{tpu_custom_call.1} parent=1 // pred_fallthru
      _
    // Predicated region
    $region10: #{tpu_custom_call.1} parent=1 // pred_check
      _
    $region11: #{tpu_custom_call.1} parent=1 // pred_check_branch
      %50 = sbr.rel (0) target = $region13
    $region12: #{tpu_custom_call.1} parent=1 // pred_region
      %51 = dma.done [#allocation3], 256
    $region13: #{tpu_custom_call.1} parent=1 // pred_fallthru
      _
    // Predicated region
    $region14: #{tpu_custom_call.1} parent=1 // pred_check
      _
    $region15: #{tpu_custom_call.1} parent=1 // pred_check_branch
      %53 = sbr.rel (0) target = $region17
    $region16: #{tpu_custom_call.1} parent=1 // pred_region
      %54 = dma.done [#allocation6], 256
    $region17: #{tpu_custom_call.1} parent=1 // pred_fallthru
      _
    %s55 = sadd.s32 0, 0
    %p56 = scmp.lt.s32.totalorder %s55, 0
    %s57 = scalar_select %p56, %s55, 0
    %s58 = smul.u32 2, %s57
    %s59 = sadd.s32 0, 0
    %p60 = scmp.lt.s32.totalorder %s59, 0
    %s61 = scalar_select %p60, %s59, 0
    %s62 = smul.u32 2, %s61
    %p63 = scmp.eq.s32.totalorder 0, 0
    // Predicated region
    $region18: #{tpu_custom_call.1} parent=1 // pred_check
      %p64 = pneg %p63
    $region19: #{tpu_custom_call.1} parent=1 // pred_check_branch
      %66 = sbr.rel (%p64) target = $region21
    $region20: #{tpu_custom_call.1} parent=1 // pred_region
      %67 = vst [vmem:[#allocation7] sm:$0xff] 0.0
      %68 = vst [vmem:[#allocation8] sm:$0xff] 0.0
    $region21: #{tpu_custom_call.1} parent=1 // pred_fallthru
      _
    %v69 = vld [vmem:[#allocation2] sm:$0xff]
    %v70 = vld [vmem:[#allocation2 + $0x8] sm:$0xff]
    %v71 = vld [vmem:[#allocation5] sm:$0xff]
    %v72 = vld [vmem:[#allocation5 + $0x8] sm:$0xff]
    %v73 = vld [vmem:[#allocation7] sm:$0xff]
    %v74 = vmul.f32 %v69, %v71
    %v75 = vmul.f32 %v70, %v72
    %v76 = vadd.f32 %v74, %v75
    %v77 = vadd.f32 %v73, %v76
    %78 = vst [vmem:[#allocation7] sm:$0xff] %v77
    %v79 = vld [vmem:[#allocation8] sm:$0xff]
    %v80 = vadd.f32 %v69, %v71
    %v81 = vadd.f32 %v70, %v72
    %v82 = vadd.f32 %v80, %v81
    %v83 = vadd.f32 %v79, %v82
    %84 = vst [vmem:[#allocation8] sm:$0xff] %v83
    // Predicated region
    $region22: #{tpu_custom_call.1} parent=1 // pred_check
      _
    $region23: #{tpu_custom_call.1} parent=1 // pred_check_branch
      %86 = sbr.rel (0) target = $region25
    $region24: #{tpu_custom_call.1} parent=1 // pred_region
      %s88 = ssub.s32 128, 128
      %89 = vsyncadd [#allocation4], %s88
      %s91 = sshll.u32 [#allocation7], 4
      %s92 = int_to_ptr.vmem [resolvable:$true] %s91
      %94 = dma.vmem_to_hbm [thread:$0]  %s92, 128, %s2, [#allocation4]
    $region25: #{tpu_custom_call.1} parent=1 // pred_fallthru
      _
    // Predicated region
    $region26: #{tpu_custom_call.1} parent=1 // pred_check
      _
    $region27: #{tpu_custom_call.1} parent=1 // pred_check_branch
      %96 = sbr.rel (0) target = $region29
    $region28: #{tpu_custom_call.1} parent=1 // pred_region
      %s98 = ssub.s32 128, 128
      %99 = vsyncadd [#allocation9], %s98
      %s101 = sshll.u32 [#allocation8], 4
      %s102 = int_to_ptr.vmem [resolvable:$true] %s101
      %104 = dma.vmem_to_hbm [thread:$0]  %s102, 128, %s3, [#allocation9]
    $region29: #{tpu_custom_call.1} parent=1 // pred_fallthru
      _
    // Predicated region
    $region30: #{tpu_custom_call.1} parent=1 // pred_check
      _
    $region31: #{tpu_custom_call.1} parent=1 // pred_check_branch
      %106 = sbr.rel (0) target = $region33
    $region32: #{tpu_custom_call.1} parent=1 // pred_region
      %107 = dma.done [#allocation4], 128
    $region33: #{tpu_custom_call.1} parent=1 // pred_fallthru
      _
    // Predicated region
    $region34: #{tpu_custom_call.1} parent=1 // pred_check
      _
    $region35: #{tpu_custom_call.1} parent=1 // pred_check_branch
      %109 = sbr.rel (0) target = $region37
    $region36: #{tpu_custom_call.1} parent=1 // pred_region
      %110 = dma.done [#allocation9], 128
    $region37: #{tpu_custom_call.1} parent=1 // pred_fallthru
      _
    %111 = vsyncpa [#allocation3], 1
    %112 = vsyncpa [#allocation6], 1
    %113 = vsyncpa [#allocation4], 1
    %114 = vsyncpa [#allocation9], 1

</llo_original>
